<compile_context>
chip_gen: v5e
topology: v5e:2x2
jax: 0.10.0
libtpu: 0.0.40
codegen_flags: <defaults>
</compile_context>

<pallas_src>
import functools

import numpy as np
import jax
import jax.numpy as jnp
from jax import lax
from jax.experimental import pallas as pl
from jax.experimental.pallas import tpu as pltpu

SQRT2 = float(np.sqrt(2.0))


def _bior_reg_kernel(x_ref, out_ref, *, Ph, Pg, lambdas):
    """Packed-input kernel.

    x_ref rows (R = 5 + Ph + Pg, each of length L):
      0: h0   1: h1   2: g0   3: g1   4: h0 (copy, partnered with h1)
      5 .. 5+Ph-1        : moment rows dotted with g0 (already * pNorm(p))
      5+Ph .. 5+Ph+Pg-1  : moment rows dotted with g1 (already * pNorm(p))

    Each loss term is weight * (row . partner - target)^2; all dot products
    are computed with a single cross-lane reduction.
    """
    lam0, lam1, lam2 = lambdas
    R = 5 + Ph + Pg

    x = x_ref[...]                                      # (R, L), one vector load
    h1 = x[1:2, :]
    g0 = x[2:3, :]
    g1 = x[3:4, :]

    ridx = lax.broadcasted_iota(jnp.int32, (R, 1), 0)   # per-row index

    # Per-row "partner" factor: ones for plain sums (l1, l2), h1 for <h0,h1>
    # (l3), g0 / g1 for the vanishing-moment dot products (l5, l6).
    partner = jnp.where(
        ridx < 4, jnp.float32(1.0),
        jnp.where(ridx == 4, h1,
                  jnp.where(ridx < 5 + Ph, g0, g1)))    # (R, L), VPU selects

    # Single cross-lane (XLU) reduction: all sums / dot products at once.
    s = jnp.sum(x * partner, axis=1, keepdims=True)     # (R, 1)

    # Per-row targets (sqrt2 for scaling-filter sums, 1 for <h0,h1>) and
    # per-row weights with the lambdas pre-folded in (no epilogue scaling).
    tgt = jnp.where(ridx < 2, jnp.float32(SQRT2),
                    jnp.where(ridx == 4, jnp.float32(1.0), jnp.float32(0.0)))
    wgt = jnp.where(ridx < 4, jnp.float32(lam0),
                    jnp.where(ridx == 4, jnp.float32(lam1), jnp.float32(lam2)))

    d = s - tgt
    # NOTE: l4 in the reference iterates over an EMPTY range (len(h) == 2) and
    # is identically zero; it is intentionally dropped here.
    out_ref[0] = jnp.sum(d * d * wgt)                   # scalar out via SMEM


def biorthogonal_wavelet_regularization(
    h,
    g,
    *,
    pNorm=lambda p: np.sqrt(2) / 2 ** p,
    n_moments=lambda L: L // 2 + 1,      # takes the filter length L (== len(g[0]) in torch)
    n_moments_dual=None,
    lambdas=(1.0, 1.0, 1.0),
):
    assert len(lambdas) == 3
    if n_moments_dual is None:
        n_moments_dual = n_moments

    h = jnp.asarray(h, jnp.float32)
    g = jnp.asarray(g, jnp.float32)
    assert h.ndim == 2 and h.shape[0] == 2
    assert g.ndim == 2 and g.shape[0] == 2
    assert h.shape[1] == g.shape[1]
    L = g.shape[1]

    # Constant moment rows r**(p-1) * pNorm(p), built in float64, cast once.
    r = np.arange(L, dtype=np.float64)

    def moment_matrix(nm):
        rows = [(r ** (p - 1)) * pNorm(p) for p in range(1, nm)]
        if not rows:                       # degenerate: contributes exactly 0
            rows = [np.zeros(L, dtype=np.float64)]
        return np.stack(rows).astype(np.float32)

    mh = moment_matrix(n_moments(L))       # dotted with g[0]  -> l5
    mg = moment_matrix(n_moments_dual(L))  # dotted with g[1]  -> l6
    Ph, Pg = int(mh.shape[0]), int(mg.shape[0])

    # Single packed VMEM input (one DMA): [h0, h1, g0, g1, h0, mh, mg].
    packed = jnp.concatenate(
        [h, g, h[0:1], jnp.asarray(mh), jnp.asarray(mg)], axis=0)

    kernel = functools.partial(
        _bior_reg_kernel, Ph=Ph, Pg=Pg,
        lambdas=tuple(float(x) for x in lambdas))

    out = pl.pallas_call(
        kernel,
        out_shape=jax.ShapeDtypeStruct((1,), jnp.float32),
        in_specs=[pl.BlockSpec(memory_space=pltpu.MemorySpace.VMEM)],
        out_specs=pl.BlockSpec(memory_space=pltpu.MemorySpace.SMEM),
    )(packed)
    return out[0]


def _reference(h, g, lambdas=(1.0, 1.0, 1.0)):
    """Pure-numpy transcription of the PyTorch forward (float64)."""
    h = np.asarray(h, np.float64)
    g = np.asarray(g, np.float64)
    L = g.shape[1]
    r = np.arange(L, dtype=np.float64)
    l1 = (h[0].sum() - np.sqrt(2)) ** 2 + (h[1].sum() - np.sqrt(2)) ** 2
    l2 = g[0].sum() ** 2 + g[1].sum() ** 2
    l3 = (np.dot(h[0], h[1]) - 1.0) ** 2
    l4 = 0.0  # empty range in the reference (len(h) == 2)
    nm = L // 2 + 1
    pnorm = lambda p: np.sqrt(2) / 2 ** p
    l5 = sum((np.dot(r ** (p - 1), g[0]) * pnorm(p)) ** 2 for p in range(1, nm))
    l6 = sum((np.dot(r ** (p - 1), g[1]) * pnorm(p)) ** 2 for p in range(1, nm))
    return lambdas[0] * (l1 + l2) + lambdas[1] * (l3 + l4) + lambdas[2] * (l5 + l6)


if __name__ == "__main__":
    key = jax.random.PRNGKey(0)
    k_h, k_g = jax.random.split(key)
    L = 8  # filter length
    h = jax.random.normal(k_h, (2, L), dtype=jnp.float32) * 0.5
    g = jax.random.normal(k_g, (2, L), dtype=jnp.float32) * 0.5

    fn = jax.jit(biorthogonal_wavelet_regularization)
    loss = jax.block_until_ready(fn(h, g))

    ref = _reference(np.asarray(h), np.asarray(g))
    np.testing.assert_allclose(float(loss), float(ref), rtol=2e-3, atol=1e-2)
    print("KERNEL_OK")
</pallas_src>

<mosaic_0001>
module attributes {stable_mosaic.version = 11 : i64} {
  func.func @_bior_reg_kernel(%arg0: memref<13x8xf32, #tpu.memory_space<vmem>>, %arg1: memref<1xf32, #tpu.memory_space<smem>>) attributes {dimension_semantics = [], scalar_prefetch = 0 : i64, scratch_operands = 0 : i64, tpu.core_type = #tpu.core_type<tc>} {
    %c0 = arith.constant 0 : index
    %c0_0 = arith.constant 0 : index
    %0 = vector.load %arg0[%c0, %c0_0] : memref<13x8xf32, #tpu.memory_space<vmem>>, vector<13x8xf32>
    %1 = vector.extract_strided_slice %0 {offsets = [1, 0], sizes = [1, 8], strides = [1, 1]} : vector<13x8xf32> to vector<1x8xf32>
    %2 = vector.extract_strided_slice %0 {offsets = [2, 0], sizes = [1, 8], strides = [1, 1]} : vector<13x8xf32> to vector<1x8xf32>
    %3 = vector.extract_strided_slice %0 {offsets = [3, 0], sizes = [1, 8], strides = [1, 1]} : vector<13x8xf32> to vector<1x8xf32>
    %4 = tpu.iota {dimensions = array<i32: 0>} : vector<13x1xi32>
    %c4_i32 = arith.constant 4 : i32
    %5 = vector.broadcast %c4_i32 : i32 to vector<13x1xi32>
    %6 = arith.cmpi slt, %4, %5 : vector<13x1xi32>
    %c4_i32_1 = arith.constant 4 : i32
    %7 = vector.broadcast %c4_i32_1 : i32 to vector<13x1xi32>
    %8 = arith.cmpi eq, %4, %7 : vector<13x1xi32>
    %c9_i32 = arith.constant 9 : i32
    %9 = vector.broadcast %c9_i32 : i32 to vector<13x1xi32>
    %10 = arith.cmpi slt, %4, %9 : vector<13x1xi32>
    %11 = vector.shape_cast %10 : vector<13x1xi1> to vector<13x1xi1>
    %12 = vector.broadcast %11 : vector<13x1xi1> to vector<13x8xi1>
    %13 = vector.shape_cast %2 : vector<1x8xf32> to vector<1x8xf32>
    %14 = vector.broadcast %13 : vector<1x8xf32> to vector<13x8xf32>
    %15 = vector.shape_cast %3 : vector<1x8xf32> to vector<1x8xf32>
    %16 = vector.broadcast %15 : vector<1x8xf32> to vector<13x8xf32>
    %17 = arith.select %12, %14, %16 : vector<13x8xi1>, vector<13x8xf32>
    %18 = vector.shape_cast %8 : vector<13x1xi1> to vector<13x1xi1>
    %19 = vector.broadcast %18 : vector<13x1xi1> to vector<13x8xi1>
    %20 = vector.shape_cast %1 : vector<1x8xf32> to vector<1x8xf32>
    %21 = vector.broadcast %20 : vector<1x8xf32> to vector<13x8xf32>
    %22 = arith.select %19, %21, %17 : vector<13x8xi1>, vector<13x8xf32>
    %cst = arith.constant 1.000000e+00 : f32
    %23 = vector.shape_cast %6 : vector<13x1xi1> to vector<13x1xi1>
    %24 = vector.broadcast %23 : vector<13x1xi1> to vector<13x8xi1>
    %25 = vector.broadcast %cst : f32 to vector<13x8xf32>
    %26 = arith.select %24, %25, %22 : vector<13x8xi1>, vector<13x8xf32>
    %27 = arith.mulf %0, %26 : vector<13x8xf32>
    %cst_2 = arith.constant dense<0.000000e+00> : vector<13xf32>
    %28 = vector.multi_reduction <add>, %27, %cst_2 [1] : vector<13x8xf32> to vector<13xf32>
    %29 = vector.shape_cast %28 : vector<13xf32> to vector<13x1xf32>
    %c2_i32 = arith.constant 2 : i32
    %30 = vector.broadcast %c2_i32 : i32 to vector<13x1xi32>
    %31 = arith.cmpi slt, %4, %30 : vector<13x1xi32>
    %c4_i32_3 = arith.constant 4 : i32
    %32 = vector.broadcast %c4_i32_3 : i32 to vector<13x1xi32>
    %33 = arith.cmpi eq, %4, %32 : vector<13x1xi32>
    %cst_4 = arith.constant 1.000000e+00 : f32
    %cst_5 = arith.constant 0.000000e+00 : f32
    %34 = vector.broadcast %cst_4 : f32 to vector<13x1xf32>
    %35 = vector.broadcast %cst_5 : f32 to vector<13x1xf32>
    %36 = arith.select %33, %34, %35 : vector<13x1xi1>, vector<13x1xf32>
    %cst_6 = arith.constant 1.41421354 : f32
    %37 = vector.broadcast %cst_6 : f32 to vector<13x1xf32>
    %38 = arith.select %31, %37, %36 : vector<13x1xi1>, vector<13x1xf32>
    %c4_i32_7 = arith.constant 4 : i32
    %39 = vector.broadcast %c4_i32_7 : i32 to vector<13x1xi32>
    %40 = arith.cmpi slt, %4, %39 : vector<13x1xi32>
    %c4_i32_8 = arith.constant 4 : i32
    %41 = vector.broadcast %c4_i32_8 : i32 to vector<13x1xi32>
    %42 = arith.cmpi eq, %4, %41 : vector<13x1xi32>
    %cst_9 = arith.constant 1.000000e+00 : f32
    %cst_10 = arith.constant 1.000000e+00 : f32
    %43 = vector.broadcast %cst_9 : f32 to vector<13x1xf32>
    %44 = vector.broadcast %cst_10 : f32 to vector<13x1xf32>
    %45 = arith.select %42, %43, %44 : vector<13x1xi1>, vector<13x1xf32>
    %cst_11 = arith.constant 1.000000e+00 : f32
    %46 = vector.broadcast %cst_11 : f32 to vector<13x1xf32>
    %47 = arith.select %40, %46, %45 : vector<13x1xi1>, vector<13x1xf32>
    %48 = arith.subf %29, %38 : vector<13x1xf32>
    %49 = arith.mulf %48, %48 : vector<13x1xf32>
    %50 = arith.mulf %49, %47 : vector<13x1xf32>
    %51 = vector.shape_cast %50 : vector<13x1xf32> to vector<1x13x1xf32>
    %cst_12 = arith.constant dense<0.000000e+00> : vector<1xf32>
    %52 = vector.multi_reduction <add>, %51, %cst_12 [1, 2] : vector<1x13x1xf32> to vector<1xf32>
    %53 = vector.shape_cast %52 : vector<1xf32> to vector<1x1x1xf32>
    %54 = vector.extract %53[0, 0, 0] : f32 from vector<1x1x1xf32>
    %c0_13 = arith.constant 0 : index
    %55 = memref.load %arg1[%c0_13] : memref<1xf32, #tpu.memory_space<smem>>
    memref.store %54, %arg1[%c0_13] : memref<1xf32, #tpu.memory_space<smem>>
    return
  }
}

</mosaic_0001>

<llo_original>
// kernel: biorthogonal_wavelet_regularization.1
$region0: #{biorthogonal_wavelet_regularization.1}
  #allocation0 [shape = 'u32[]', space=smem, size = 0x4, offset = 0x4, fixed_abs, tag = 'smem constant byte address 0x4 - core index']
  #allocation1 [shape = 'u32[72,128]{1,0:T(1,128)}', space=vmem, size = 0x9000, scoped, tag = 'internal scratch']
  %s0 = inlined_call_operand.vmem [shape: f32[13,8], index: 0, kind: input, shape index: {}]
  %s1 = inlined_call_operand.hbm [shape: f32[1], index: 1, kind: output, shape index: {}]
  %s2 = sld [smem:[#allocation0]]
  $region14: #{biorthogonal_wavelet_regularization.1} parent=0
    _
  %s4 = ssub.s32 1, %s2
  %s5 = scalar_select 0, %s4, %s2
  $region1: #{biorthogonal_wavelet_regularization.1} parent=0
    #allocation2 [shape = 'u8[512]{0}', space=smem, size = 0x200, scoped, tag = 'output window, operand 0, single buffered']
    #allocation3 [shape = 's32[1]{0}', space=sflag, size = 0x4, scoped, tag = 'scoped memory for biorthogonal_wavelet_regularization.1']
    %6 = vsyncpa [#allocation3], 0
    // Predicated region
    $region2: #{biorthogonal_wavelet_regularization.1} parent=1 // pred_check
      _
    $region3: #{biorthogonal_wavelet_regularization.1} parent=1 // pred_check_branch
      %8 = sbr.rel (0) target = $region5
    $region4: #{biorthogonal_wavelet_regularization.1} parent=1 // pred_region
      _
    $region5: #{biorthogonal_wavelet_regularization.1} parent=1 // pred_fallthru
      _
    %v9 = vld [vmem:[%s0] sm:$0xff]
    %v10 = vld [vmem:[%s0 + $0x8] sm:$0x1f]
    %v11 = vlaneseq
    %v12 = vshrl.u32 %v11, 7
    %v13 = vadd.s32 %v12, 8
    %vm14 = vcmp.lt.s32.totalorder %v12, 4
    %vm15 = vcmp.lt.s32.totalorder %v13, 4
    %vm16 = vcmp.eq.s32.totalorder %v12, 4
    %vm17 = vcmp.eq.s32.totalorder %v13, 4
    %vm18 = vcmp.lt.s32.totalorder %v12, 9
    %vm19 = vcmp.lt.s32.totalorder %v13, 9
    %v20 = vsel %vm18, 1, 0
    %v21 = vsel %vm19, 1, 0
    %vm22 = vcmp.eq.s32.totalorder %v20, 1
    %vm23 = vcmp.eq.s32.totalorder %v21, 1
    %v24 = vperm.slane %v9, 2
    %v25 = vperm.slane %v9, 3
    %v26 = vsel %vm22, %v24, %v25
    %v27 = vsel %vm23, %v24, %v25
    %v28 = vsel %vm16, 1, 0
    %v29 = vsel %vm17, 1, 0
    %vm30 = vcmp.eq.s32.totalorder %v28, 1
    %vm31 = vcmp.eq.s32.totalorder %v29, 1
    %v32 = vperm.slane %v9, 1
    %v33 = vsel %vm30, %v32, %v26
    %v34 = vsel %vm31, %v32, %v27
    %v35 = vsel %vm14, 1, 0
    %v36 = vsel %vm15, 1, 0
    %vm37 = vcmp.eq.s32.totalorder %v35, 1
    %vm38 = vcmp.eq.s32.totalorder %v36, 1
    %v39 = vsel %vm37, 1.0, %v33
    %v40 = vsel %vm38, 1.0, %v34
    %v41 = vmul.f32 %v9, %v39
    %v42 = vmul.f32 %v10, %v40
    %vm43 = vcmask 64512
    %v44 = vsel %vm43, %v41, 0.0
    %45 = vadd.xlane.f32.xlu0 %v44
    %v46 = vpop.xlane.xlu0 %45
    %vm47 = vcmask 61440
    %v48 = vsel %vm47, %v42, 0.0
    %49 = vadd.xlane.f32.xlu0 %v48
    %v50 = vpop.xlane.xlu0 %49
    %vm51 = vcmp.lt.s32.totalorder %v12, 2
    %vm52 = vcmp.lt.s32.totalorder %v13, 2
    %v53 = vsel %vm16, 1.0, 0.0
    %v54 = vsel %vm17, 1.0, 0.0
    %v55 = vsel %vm51, 1.4142135, %v53
    %v56 = vsel %vm52, 1.4142135, %v54
    %v57 = vsub.f32 %v46, %v55
    %v58 = vsub.f32 %v50, %v56
    %v59 = vmul.f32 %v57, %v57
    %v60 = vmul.f32 %v58, %v58
    %vm61 = vcmask 7168
    %v62 = vsel %vm61, %v59, 0.0
    %vm63 = vcmask 4096
    %v64 = vsel %vm63, %v60, 0.0
    %v65 = vadd.f32 %v62, %v64
    %66 = vadd.xlane.f32.xlu0 %v65
    %v67 = vpop.xlane.xlu0 %66
    %v68 = vrot.slane %v67, 4
    %v69 = vadd.f32 %v67, %v68
    %v70 = vrot.slane %v69, 2
    %v71 = vadd.f32 %v69, %v70
    %v72 = vrot.slane %v71, 1
    %v73 = vadd.f32 %v71, %v72
    %s74 = vtos %v73
    %s75 = scalar_lea.smem [#allocation2], 0
    %76 = sst [smem:[%s75]] %s74
    // Predicated region
    $region6: #{biorthogonal_wavelet_regularization.1} parent=1 // pred_check
      _
    $region7: #{biorthogonal_wavelet_regularization.1} parent=1 // pred_check_branch
      %78 = sbr.rel (0) target = $region9
    $region8: #{biorthogonal_wavelet_regularization.1} parent=1 // pred_region
      %80 = vsyncadd [#allocation3], 0
      %s82 = sshll.u32 %s1, 4
      %s83 = int_to_ptr.hbm [resolvable:$true] %s82
      %85 = dma.smem_to_hbm [#allocation2], 16, %s83, [#allocation3]
    $region9: #{biorthogonal_wavelet_regularization.1} parent=1 // pred_fallthru
      _
    // Predicated region
    $region10: #{biorthogonal_wavelet_regularization.1} parent=1 // pred_check
      _
    $region11: #{biorthogonal_wavelet_regularization.1} parent=1 // pred_check_branch
      %87 = sbr.rel (0) target = $region13
    $region12: #{biorthogonal_wavelet_regularization.1} parent=1 // pred_region
      %89 = dma.done [#allocation3], 16
    $region13: #{biorthogonal_wavelet_regularization.1} parent=1 // pred_fallthru
      _
    %90 = sfence
    %91 = vsyncpa [#allocation3], 1

</llo_original>
